<compile_context>
chip_gen: v7x
topology: tpu7x:2x2x1
jax: 0.10.0
libtpu: 0.0.40
codegen_flags: <defaults>
</compile_context>

<pallas_src>
import functools

import jax
import jax.numpy as jnp
from jax import lax
from jax.experimental import pallas as pl
from jax.experimental.pallas import tpu as pltpu


LANES = 128
SUBLANES = 8
BLOCK_ROWS = 2048          # (2048, 128) f32 block = 1 MiB


def _shrl(x, n):
    """Logical (unsigned) right shift on int32 bit patterns."""
    return lax.shift_right_logical(x, jnp.int32(n))


def _mix32(x):
    """'lowbias32' integer finalizer: int32 -> well-mixed int32 bits."""
    x = (x ^ _shrl(x, 16)) * jnp.int32(0x7FEB352D)
    x = (x ^ _shrl(x, 15)) * jnp.int32(-2073319797)   # 0x846CA68B as int32
    x = x ^ _shrl(x, 16)
    return x


def _bits_to_unit_float(bits):
    """Random int32 bits -> float32 in [1.0, 2.0) via mantissa stuffing."""
    mant = _shrl(bits, 9) | jnp.int32(0x3F800000)
    return lax.bitcast_convert_type(mant, jnp.float32)


def _sin_turns(t):
    """Approx sin(2*pi*t) for t in [0, 1.5); max abs error ~1e-3."""
    r = t - jnp.where(t >= 0.5, jnp.float32(1.0), jnp.float32(0.0))
    y = jnp.float32(8.0) * r * (jnp.float32(1.0) - jnp.float32(2.0) * jnp.abs(r))
    return jnp.float32(0.225) * (y * jnp.abs(y) - y) + y


def _gaussian_noise_kernel(seed_ref, x_ref, o_ref, *, sigma):
    block_rows, lanes = x_ref.shape
    half = block_rows // 2

    # One counter per Box-Muller pair: globally unique across all grid blocks
    # for every (half-row, lane) position.
    row = lax.broadcasted_iota(jnp.int32, (half, lanes), 0)
    col = lax.broadcasted_iota(jnp.int32, (half, lanes), 1)
    block_off = pl.program_id(0) * half
    ctr = (block_off + row) * lanes + col

    # Mix the seed (int32 wrap-around == uint32 bit arithmetic).
    key = seed_ref[0] * jnp.int32(-1640531527)         # seed * 0x9E3779B9
    bits1 = _mix32(ctr ^ key)
    bits2 = _mix32(bits1 ^ jnp.int32(0x68E31DA4))

    # Uniforms: u1 in (0, 1] (safe for log), u2 in [0, 1).
    u1 = jnp.float32(2.0) - _bits_to_unit_float(bits1)
    u2 = _bits_to_unit_float(bits2) - jnp.float32(1.0)

    # Box-Muller, using BOTH outputs.
    r = jnp.sqrt(jnp.float32(-2.0) * jnp.log(u1))
    z_cos = r * _sin_turns(u2 + jnp.float32(0.25))     # cos(2*pi*u2)
    z_sin = r * _sin_turns(u2)                         # sin(2*pi*u2)

    s = jnp.float32(sigma)
    o_ref[0:half, :] = x_ref[0:half, :] + (s * z_cos).astype(o_ref.dtype)
    o_ref[half:block_rows, :] = (
        x_ref[half:block_rows, :] + (s * z_sin).astype(o_ref.dtype)
    )


def gaussian_noise(x, sigma, *, seed=0, training=True):
    """Pallas equivalent of GaussianNoise.forward.

    Args:
      x: float array of any shape (NCHW in the conv use case).
      sigma: noise std (python float).
      seed: int seed (deterministic noise for a fixed seed + tiling).
      training: if False, identity (matches nn.Module eval mode).
    """
    if not training or float(sigma) == 0.0:
        return x

    orig_shape = x.shape
    total = x.size

    tile = SUBLANES * LANES                    # 1024 = one (8, 128) vreg tile
    flat = jnp.ravel(x)
    padded_total = total
    if total % tile != 0:                      # pad only when actually needed
        padded_total = ((total + tile - 1) // tile) * tile
        flat = jnp.pad(flat, (0, padded_total - total))
    rows = padded_total // LANES               # multiple of 8 (hence even)
    x2d = flat.reshape(rows, LANES)

    block_rows = min(BLOCK_ROWS, rows)
    grid = (pl.cdiv(rows, block_rows),)

    seed_arr = jnp.asarray([seed], dtype=jnp.int32)
    kernel = functools.partial(_gaussian_noise_kernel, sigma=float(sigma))

    out2d = pl.pallas_call(
        kernel,
        out_shape=jax.ShapeDtypeStruct((rows, LANES), x.dtype),
        grid_spec=pltpu.PrefetchScalarGridSpec(
            num_scalar_prefetch=1,
            grid=grid,
            in_specs=[
                pl.BlockSpec((block_rows, LANES), lambda i, seed_ref: (i, 0)),
            ],
            out_specs=pl.BlockSpec((block_rows, LANES), lambda i, seed_ref: (i, 0)),
        ),
        compiler_params=pltpu.CompilerParams(
            dimension_semantics=("parallel",),
        ),
    )(seed_arr, x2d)

    out_flat = out2d.reshape(-1)
    if padded_total != total:
        out_flat = out_flat[:total]
    return out_flat.reshape(orig_shape)


if __name__ == "__main__":
    key = jax.random.PRNGKey(0)
    # Small NCHW input consistent with a conv-style use of GaussianNoise.
    x = jax.random.normal(key, (2, 4, 16, 16), dtype=jnp.float32)
    sigma = 0.1

    # Training mode: x + N(0, sigma^2)
    y_train = jax.block_until_ready(gaussian_noise(x, sigma, seed=42, training=True))

    # Eval mode: identity
    y_eval = jax.block_until_ready(gaussian_noise(x, sigma, training=False))

    assert y_train.shape == x.shape and y_train.dtype == x.dtype
    assert bool(jnp.all(y_eval == x))

    # Sanity: noise = y - x should have ~zero mean and ~sigma std.
    noise = y_train - x
    mean = float(jnp.mean(noise))
    std = float(jnp.std(noise))
    assert abs(mean) < 0.02, mean
    assert abs(std - sigma) < 0.25 * sigma, std

    print("KERNEL_OK")
</pallas_src>

<mosaic_0001>
module attributes {stable_mosaic.version = 11 : i64} {
  func.func @_gaussian_noise_kernel(%arg0: i32, %arg1: memref<1xi32, #tpu.memory_space<smem>>, %arg2: memref<16x128xf32, #tpu.memory_space<vmem>>, %arg3: memref<16x128xf32, #tpu.memory_space<vmem>>) attributes {dimension_semantics = [#tpu.dimension_semantics<parallel>], iteration_bounds = array<i64: 1>, scalar_prefetch = 1 : i64, scratch_operands = 0 : i64, tpu.core_type = #tpu.core_type<tc>, window_params = [{transform_indices = @transform_0, window_bounds = array<i64: 16, 128>}, {transform_indices = @transform_1, window_bounds = array<i64: 16, 128>}]} {
    %0 = tpu.iota {dimensions = array<i32: 0>} : vector<8x128xi32>
    %1 = tpu.iota {dimensions = array<i32: 1>} : vector<8x128xi32>
    %c8_i32 = arith.constant 8 : i32
    %2 = arith.muli %arg0, %c8_i32 : i32
    %3 = vector.broadcast %2 : i32 to vector<8x128xi32>
    %4 = arith.addi %3, %0 : vector<8x128xi32>
    %c128_i32 = arith.constant 128 : i32
    %5 = vector.broadcast %c128_i32 : i32 to vector<8x128xi32>
    %6 = arith.muli %4, %5 : vector<8x128xi32>
    %7 = arith.addi %6, %1 : vector<8x128xi32>
    %c0 = arith.constant 0 : index
    %8 = memref.load %arg1[%c0] : memref<1xi32, #tpu.memory_space<smem>>
    %c-1640531527_i32 = arith.constant -1640531527 : i32
    %9 = arith.muli %8, %c-1640531527_i32 : i32
    %10 = vector.broadcast %9 : i32 to vector<8x128xi32>
    %11 = arith.xori %7, %10 : vector<8x128xi32>
    %c16_i32 = arith.constant 16 : i32
    %12 = vector.broadcast %c16_i32 : i32 to vector<8x128xi32>
    %13 = arith.shrui %11, %12 : vector<8x128xi32>
    %14 = arith.xori %11, %13 : vector<8x128xi32>
    %c2146121005_i32 = arith.constant 2146121005 : i32
    %15 = vector.broadcast %c2146121005_i32 : i32 to vector<8x128xi32>
    %16 = arith.muli %14, %15 : vector<8x128xi32>
    %c15_i32 = arith.constant 15 : i32
    %17 = vector.broadcast %c15_i32 : i32 to vector<8x128xi32>
    %18 = arith.shrui %16, %17 : vector<8x128xi32>
    %19 = arith.xori %16, %18 : vector<8x128xi32>
    %c-2073319797_i32 = arith.constant -2073319797 : i32
    %20 = vector.broadcast %c-2073319797_i32 : i32 to vector<8x128xi32>
    %21 = arith.muli %19, %20 : vector<8x128xi32>
    %c16_i32_0 = arith.constant 16 : i32
    %22 = vector.broadcast %c16_i32_0 : i32 to vector<8x128xi32>
    %23 = arith.shrui %21, %22 : vector<8x128xi32>
    %24 = arith.xori %21, %23 : vector<8x128xi32>
    %c1759714724_i32 = arith.constant 1759714724 : i32
    %25 = vector.broadcast %c1759714724_i32 : i32 to vector<8x128xi32>
    %26 = arith.xori %24, %25 : vector<8x128xi32>
    %c16_i32_1 = arith.constant 16 : i32
    %27 = vector.broadcast %c16_i32_1 : i32 to vector<8x128xi32>
    %28 = arith.shrui %26, %27 : vector<8x128xi32>
    %29 = arith.xori %26, %28 : vector<8x128xi32>
    %c2146121005_i32_2 = arith.constant 2146121005 : i32
    %30 = vector.broadcast %c2146121005_i32_2 : i32 to vector<8x128xi32>
    %31 = arith.muli %29, %30 : vector<8x128xi32>
    %c15_i32_3 = arith.constant 15 : i32
    %32 = vector.broadcast %c15_i32_3 : i32 to vector<8x128xi32>
    %33 = arith.shrui %31, %32 : vector<8x128xi32>
    %34 = arith.xori %31, %33 : vector<8x128xi32>
    %c-2073319797_i32_4 = arith.constant -2073319797 : i32
    %35 = vector.broadcast %c-2073319797_i32_4 : i32 to vector<8x128xi32>
    %36 = arith.muli %34, %35 : vector<8x128xi32>
    %c16_i32_5 = arith.constant 16 : i32
    %37 = vector.broadcast %c16_i32_5 : i32 to vector<8x128xi32>
    %38 = arith.shrui %36, %37 : vector<8x128xi32>
    %39 = arith.xori %36, %38 : vector<8x128xi32>
    %c9_i32 = arith.constant 9 : i32
    %40 = vector.broadcast %c9_i32 : i32 to vector<8x128xi32>
    %41 = arith.shrui %24, %40 : vector<8x128xi32>
    %c1065353216_i32 = arith.constant 1065353216 : i32
    %42 = vector.broadcast %c1065353216_i32 : i32 to vector<8x128xi32>
    %43 = arith.ori %41, %42 : vector<8x128xi32>
    %44 = tpu.bitcast %43 : vector<8x128xi32> -> vector<8x128xf32>
    %cst = arith.constant 2.000000e+00 : f32
    %45 = vector.broadcast %cst : f32 to vector<8x128xf32>
    %46 = arith.subf %45, %44 : vector<8x128xf32>
    %c9_i32_6 = arith.constant 9 : i32
    %47 = vector.broadcast %c9_i32_6 : i32 to vector<8x128xi32>
    %48 = arith.shrui %39, %47 : vector<8x128xi32>
    %c1065353216_i32_7 = arith.constant 1065353216 : i32
    %49 = vector.broadcast %c1065353216_i32_7 : i32 to vector<8x128xi32>
    %50 = arith.ori %48, %49 : vector<8x128xi32>
    %51 = tpu.bitcast %50 : vector<8x128xi32> -> vector<8x128xf32>
    %cst_8 = arith.constant 1.000000e+00 : f32
    %52 = vector.broadcast %cst_8 : f32 to vector<8x128xf32>
    %53 = arith.subf %51, %52 : vector<8x128xf32>
    %54 = math.log %46 : vector<8x128xf32>
    %cst_9 = arith.constant -2.000000e+00 : f32
    %55 = vector.broadcast %cst_9 : f32 to vector<8x128xf32>
    %56 = arith.mulf %55, %54 : vector<8x128xf32>
    %57 = math.sqrt %56 : vector<8x128xf32>
    %cst_10 = arith.constant 2.500000e-01 : f32
    %58 = vector.broadcast %cst_10 : f32 to vector<8x128xf32>
    %59 = arith.addf %53, %58 : vector<8x128xf32>
    %cst_11 = arith.constant 5.000000e-01 : f32
    %60 = vector.broadcast %cst_11 : f32 to vector<8x128xf32>
    %61 = arith.cmpf oge, %59, %60 : vector<8x128xf32>
    %cst_12 = arith.constant 1.000000e+00 : f32
    %cst_13 = arith.constant 0.000000e+00 : f32
    %62 = vector.broadcast %cst_12 : f32 to vector<8x128xf32>
    %63 = vector.broadcast %cst_13 : f32 to vector<8x128xf32>
    %64 = arith.select %61, %62, %63 : vector<8x128xi1>, vector<8x128xf32>
    %65 = arith.subf %59, %64 : vector<8x128xf32>
    %cst_14 = arith.constant 8.000000e+00 : f32
    %66 = vector.broadcast %cst_14 : f32 to vector<8x128xf32>
    %67 = arith.mulf %66, %65 : vector<8x128xf32>
    %68 = math.absf %65 : vector<8x128xf32>
    %cst_15 = arith.constant 2.000000e+00 : f32
    %69 = vector.broadcast %cst_15 : f32 to vector<8x128xf32>
    %70 = arith.mulf %69, %68 : vector<8x128xf32>
    %cst_16 = arith.constant 1.000000e+00 : f32
    %71 = vector.broadcast %cst_16 : f32 to vector<8x128xf32>
    %72 = arith.subf %71, %70 : vector<8x128xf32>
    %73 = arith.mulf %67, %72 : vector<8x128xf32>
    %74 = math.absf %73 : vector<8x128xf32>
    %75 = arith.mulf %73, %74 : vector<8x128xf32>
    %76 = arith.subf %75, %73 : vector<8x128xf32>
    %cst_17 = arith.constant 2.250000e-01 : f32
    %77 = vector.broadcast %cst_17 : f32 to vector<8x128xf32>
    %78 = arith.mulf %77, %76 : vector<8x128xf32>
    %79 = arith.addf %78, %73 : vector<8x128xf32>
    %80 = arith.mulf %57, %79 : vector<8x128xf32>
    %cst_18 = arith.constant 5.000000e-01 : f32
    %81 = vector.broadcast %cst_18 : f32 to vector<8x128xf32>
    %82 = arith.cmpf oge, %53, %81 : vector<8x128xf32>
    %cst_19 = arith.constant 1.000000e+00 : f32
    %cst_20 = arith.constant 0.000000e+00 : f32
    %83 = vector.broadcast %cst_19 : f32 to vector<8x128xf32>
    %84 = vector.broadcast %cst_20 : f32 to vector<8x128xf32>
    %85 = arith.select %82, %83, %84 : vector<8x128xi1>, vector<8x128xf32>
    %86 = arith.subf %53, %85 : vector<8x128xf32>
    %cst_21 = arith.constant 8.000000e+00 : f32
    %87 = vector.broadcast %cst_21 : f32 to vector<8x128xf32>
    %88 = arith.mulf %87, %86 : vector<8x128xf32>
    %89 = math.absf %86 : vector<8x128xf32>
    %cst_22 = arith.constant 2.000000e+00 : f32
    %90 = vector.broadcast %cst_22 : f32 to vector<8x128xf32>
    %91 = arith.mulf %90, %89 : vector<8x128xf32>
    %cst_23 = arith.constant 1.000000e+00 : f32
    %92 = vector.broadcast %cst_23 : f32 to vector<8x128xf32>
    %93 = arith.subf %92, %91 : vector<8x128xf32>
    %94 = arith.mulf %88, %93 : vector<8x128xf32>
    %95 = math.absf %94 : vector<8x128xf32>
    %96 = arith.mulf %94, %95 : vector<8x128xf32>
    %97 = arith.subf %96, %94 : vector<8x128xf32>
    %cst_24 = arith.constant 2.250000e-01 : f32
    %98 = vector.broadcast %cst_24 : f32 to vector<8x128xf32>
    %99 = arith.mulf %98, %97 : vector<8x128xf32>
    %100 = arith.addf %99, %94 : vector<8x128xf32>
    %101 = arith.mulf %57, %100 : vector<8x128xf32>
    %c0_25 = arith.constant 0 : index
    %c0_26 = arith.constant 0 : index
    %102 = vector.load %arg2[%c0_25, %c0_26] : memref<16x128xf32, #tpu.memory_space<vmem>>, vector<8x128xf32>
    %cst_27 = arith.constant 1.000000e-01 : f32
    %103 = vector.broadcast %cst_27 : f32 to vector<8x128xf32>
    %104 = arith.mulf %103, %80 : vector<8x128xf32>
    %105 = arith.addf %102, %104 : vector<8x128xf32>
    %c0_28 = arith.constant 0 : index
    %c0_29 = arith.constant 0 : index
    %106 = vector.load %arg3[%c0_28, %c0_29] : memref<16x128xf32, #tpu.memory_space<vmem>>, vector<8x128xf32>
    tpu.vector_store %arg3[%c0_28, %c0_29], %105 {strides = array<i32>} : memref<16x128xf32, #tpu.memory_space<vmem>>, vector<8x128xf32>,
    %c8 = arith.constant 8 : index
    %c0_30 = arith.constant 0 : index
    %107 = vector.load %arg2[%c8, %c0_30] : memref<16x128xf32, #tpu.memory_space<vmem>>, vector<8x128xf32>
    %cst_31 = arith.constant 1.000000e-01 : f32
    %108 = vector.broadcast %cst_31 : f32 to vector<8x128xf32>
    %109 = arith.mulf %108, %101 : vector<8x128xf32>
    %110 = arith.addf %107, %109 : vector<8x128xf32>
    %c8_32 = arith.constant 8 : index
    %c0_33 = arith.constant 0 : index
    %111 = vector.load %arg3[%c8_32, %c0_33] : memref<16x128xf32, #tpu.memory_space<vmem>>, vector<8x128xf32>
    tpu.vector_store %arg3[%c8_32, %c0_33], %110 {strides = array<i32>} : memref<16x128xf32, #tpu.memory_space<vmem>>, vector<8x128xf32>,
    return
  }
  func.func @transform_0(%arg0: i32, %arg1: memref<1xi32, #tpu.memory_space<smem>>) -> (i32, i32) {
    %c0_i32 = arith.constant 0 : i32
    %c0_i32_0 = arith.constant 0 : i32
    return %arg0, %c0_i32 : i32, i32
  }
  func.func @transform_1(%arg0: i32, %arg1: memref<1xi32, #tpu.memory_space<smem>>) -> (i32, i32) {
    %c0_i32 = arith.constant 0 : i32
    %c0_i32_0 = arith.constant 0 : i32
    return %arg0, %c0_i32 : i32, i32
  }
}

</mosaic_0001>

<llo_original>
// kernel: tpu_custom_call.1
$region0: #{tpu_custom_call.1}
  #allocation0 [shape = 'u32[]', space=smem, size = 0x4, offset = 0x4, fixed_abs, tag = 'smem constant byte address 0x4 - core index']
  #allocation1 [shape = 'u32[144,128]{1,0:T(1,128)}', space=vmem, size = 0x12000, scoped, tag = 'internal scratch']
  #allocation2 [shape = 's32[1]{0}', space=sflag, size = 0x4, scoped, tag = 'scoped memory for tpu_custom_call.1']
  #allocation3 [shape = 's32[1]{0:T(128)S(6)}', space=smem, size = 0x200, scoped, tag = 'prefetched SMEM operand 0']
  %s0 = inlined_call_operand.<no memory space> [shape: s32[1], index: 0, kind: input, shape index: {}]
  %s1 = inlined_call_operand.hbm [shape: f32[16,128], index: 1, kind: input, shape index: {}]
  %s2 = inlined_call_operand.hbm [shape: f32[16,128], index: 2, kind: output, shape index: {}]
  %s3 = sld [smem:[#allocation0]]
  $region18: #{tpu_custom_call.1} parent=0
    _
  %s5 = ssub.s32 1, %s3
  %s6 = scalar_select 0, %s5, %s3
  %7 = sst [smem:[#allocation3]] %s0
  $region1: #{tpu_custom_call.1} parent=0
    #allocation4 [shape = 'u8[8192]{0}', space=vmem, size = 0x2000, scoped, tag = 'input window, operand 1, single buffered']
    #allocation5 [shape = 's32[1]{0}', space=sflag, size = 0x4, scoped, tag = 'scoped memory for tpu_custom_call.1']
    #allocation6 [shape = 's32[1]{0}', space=sflag, size = 0x4, scoped, tag = 'scoped memory for tpu_custom_call.1']
    #allocation7 [shape = 'u8[8192]{0}', space=vmem, size = 0x2000, scoped, tag = 'output window, operand 0, single buffered']
    %8 = vsyncpa [#allocation5], 0
    %9 = vsyncpa [#allocation6], 0
    // Predicated region
    $region2: #{tpu_custom_call.1} parent=1 // pred_check
      _
    $region3: #{tpu_custom_call.1} parent=1 // pred_check_branch
      %11 = sbr.rel (0) target = $region5
    $region4: #{tpu_custom_call.1} parent=1 // pred_region
      %s13 = ssub.s32 256, 256
      %14 = vsyncadd [#allocation5], %s13
      %s15 = sshll.u32 [#allocation4], 4
      %s16 = int_to_ptr.vmem [resolvable:$true] %s15
      %21 = dma.hbm_to_vmem [thread:$0]  %s1, 256, %s16, [#allocation5], 128, 128, 8
    $region5: #{tpu_custom_call.1} parent=1 // pred_fallthru
      _
    // Predicated region
    $region6: #{tpu_custom_call.1} parent=1 // pred_check
      _
    $region7: #{tpu_custom_call.1} parent=1 // pred_check_branch
      %23 = sbr.rel (0) target = $region9
    $region8: #{tpu_custom_call.1} parent=1 // pred_region
      %24 = dma.done [#allocation5], 256
    $region9: #{tpu_custom_call.1} parent=1 // pred_fallthru
      _
    %v25 = vlaneseq
    %v26 = vshrl.u32 %v25, 7
    %v27 = vlaneseq
    %v28 = vand.u32 %v27, 127
    %s29 = smul.u32 0, 8
    %v30 = vstv %s29
    %v31 = vadd.s32 %v30, %v26
    %v32 = vmul.u32 %v31, 128
    %v33 = vadd.s32 %v32, %v28
    %s34 = sld [smem:[#allocation3]]
    %s35 = smul.u32 %s34, 2654435769
    %v36 = vstv %s35
    %v37 = vxor.u32 %v33, %v36
    %v38 = vshrl.u32 %v37, 16
    %v39 = vxor.u32 %v37, %v38
    %v40 = vmul.u32 %v39, 2146121005
    %v41 = vshrl.u32 %v40, 15
    %v42 = vxor.u32 %v40, %v41
    %v43 = vmul.u32 %v42, 2221647499
    %v44 = vshrl.u32 %v43, 16
    %v45 = vxor.u32 %v43, %v44
    %v46 = vxor.u32 %v45, 1759714724
    %v47 = vshrl.u32 %v46, 16
    %v48 = vxor.u32 %v46, %v47
    %v49 = vmul.u32 %v48, 2146121005
    %v50 = vshrl.u32 %v49, 15
    %v51 = vxor.u32 %v49, %v50
    %v52 = vmul.u32 %v51, 2221647499
    %v53 = vshrl.u32 %v52, 16
    %v54 = vxor.u32 %v52, %v53
    %v55 = vshrl.u32 %v45, 9
    %v56 = vor.u32 %v55, 1065353216
    %v58 = vsub.f32 2.0, %v56
    %v59 = vshrl.u32 %v54, 9
    %v60 = vor.u32 %v59, 1065353216
    %v62 = vsub.f32 %v60, 1.0
    %v63 = vlog2.pop %v58
    %v64 = vmul.f32 %v63, 0.6931472
    %v65 = vmul.f32 %v64, -2.0
    %v66 = vrsqrt.pop %v65
    %v67 = vmul.f32 %v65, %v66
    %vm68 = vcmp.eq.f32.partialorder %v65, inf
    %v69 = vsel %vm68, %v65, %v67
    %vm70 = vcmp.eq.f32.partialorder %v65, 0.0
    %v71 = vand.u32 %v65, 2147483648
    %v72 = vsel %vm70, %v71, %v69
    %v73 = vadd.f32 %v62, 0.25
    %vm74 = vcmp.ge.f32.partialorder %v73, 0.5
    %v75 = vsel %vm74, 1.0, 0.0
    %v76 = vsub.f32 %v73, %v75
    %v77 = vmul.f32 %v76, 8.0
    %v78 = vand.u32 2147483647, %v76
    %v79 = vmul.f32 %v78, 2.0
    %v80 = vsub.f32 1.0, %v79
    %v81 = vmul.f32 %v77, %v80
    %v82 = vand.u32 2147483647, %v81
    %v83 = vmul.f32 %v81, %v82
    %v84 = vsub.f32 %v83, %v81
    %v85 = vmul.f32 %v84, 0.225
    %v86 = vadd.f32 %v85, %v81
    %v87 = vmul.f32 %v72, %v86
    %vm88 = vcmp.ge.f32.partialorder %v62, 0.5
    %v89 = vsel %vm88, 1.0, 0.0
    %v90 = vsub.f32 %v62, %v89
    %v91 = vmul.f32 %v90, 8.0
    %v92 = vand.u32 2147483647, %v90
    %v93 = vmul.f32 %v92, 2.0
    %v94 = vsub.f32 1.0, %v93
    %v95 = vmul.f32 %v91, %v94
    %v96 = vand.u32 2147483647, %v95
    %v97 = vmul.f32 %v95, %v96
    %v98 = vsub.f32 %v97, %v95
    %v99 = vmul.f32 %v98, 0.225
    %v100 = vadd.f32 %v99, %v95
    %v101 = vmul.f32 %v72, %v100
    %v102 = vld [vmem:[#allocation4] sm:$0xff]
    %v103 = vmul.f32 %v87, 0.1
    %v104 = vadd.f32 %v102, %v103
    %105 = vst [vmem:[#allocation7] sm:$0xff] %v104
    %v106 = vld [vmem:[#allocation4 + $0x8] sm:$0xff]
    %v107 = vmul.f32 %v101, 0.1
    %v108 = vadd.f32 %v106, %v107
    %109 = vst [vmem:[#allocation7 + $0x8] sm:$0xff] %v108
    // Predicated region
    $region10: #{tpu_custom_call.1} parent=1 // pred_check
      _
    $region11: #{tpu_custom_call.1} parent=1 // pred_check_branch
      %111 = sbr.rel (0) target = $region13
    $region12: #{tpu_custom_call.1} parent=1 // pred_region
      %s113 = ssub.s32 256, 256
      %114 = vsyncadd [#allocation6], %s113
      %s115 = sshll.u32 [#allocation7], 4
      %s116 = int_to_ptr.vmem [resolvable:$true] %s115
      %121 = dma.vmem_to_hbm [thread:$0]  %s116, 256, %s2, [#allocation6], 128, 128, 8
    $region13: #{tpu_custom_call.1} parent=1 // pred_fallthru
      _
    // Predicated region
    $region14: #{tpu_custom_call.1} parent=1 // pred_check
      _
    $region15: #{tpu_custom_call.1} parent=1 // pred_check_branch
      %123 = sbr.rel (0) target = $region17
    $region16: #{tpu_custom_call.1} parent=1 // pred_region
      %124 = dma.done [#allocation6], 256
    $region17: #{tpu_custom_call.1} parent=1 // pred_fallthru
      _
    %125 = vsyncpa [#allocation5], 1
    %126 = vsyncpa [#allocation6], 1

</llo_original>
